<compile_context>
chip_gen: v7x
topology: tpu7x:2x2x1
jax: 0.10.0
libtpu: 0.0.40
codegen_flags: <defaults>
</compile_context>

<pallas_src>
import numpy as np
import jax
import jax.numpy as jnp
from jax.experimental import pallas as pl
from jax.experimental.pallas import tpu as pltpu


# --------------------------------------------------------------------------
# One-shot phase precompute: cr + i*ci = exp(i * pi * sigmoid(mod_expanded))
# Runs once over the small (inner, inner) map -> negligible EUP work.
# --------------------------------------------------------------------------
def _phase_kernel(m_ref, cr_ref, ci_ref):
    phase = jnp.float32(np.pi) * jax.nn.sigmoid(m_ref[...])
    cr_ref[...] = jnp.cos(phase)
    ci_ref[...] = jnp.sin(phase)


# --------------------------------------------------------------------------
# Streaming complex multiply: (xr + i*xi) * (cr + i*ci), cr/ci broadcast over rows.
# Pure VPU elementwise, HBM-bound.
# --------------------------------------------------------------------------
def _modmul_kernel(xr_ref, xi_ref, cr_ref, ci_ref, or_ref, oi_ref):
    cr = cr_ref[...]          # (1, hw_tile) -- broadcast along sublanes
    ci = ci_ref[...]
    xr = xr_ref[...]          # (bc_tile, hw_tile)
    xi = xi_ref[...]
    or_ref[...] = xr * cr - xi * ci
    oi_ref[...] = xr * ci + xi * cr


def _choose_tiles(bc, hw, *, target_plane_bytes=3 << 20):
    """Pick (bc_tile, hw_tile) for the (BC, HW) f32 planes.

    Legality (f32): bc_tile must be a multiple of 8 or equal BC; hw_tile must be a
    multiple of 128 or equal HW.  Grids may be ragged (pl.cdiv): out-of-range reads of
    the last block are garbage and the corresponding writes are masked, which is safe
    for a pure elementwise op.

    Budget: one plane tile <= ~3 MiB, so the 4 double-buffered x/out planes total
    ~24 MiB -- amortizes per-step overhead on v6e/v5e and fits v7x's 64 MiB VMEM/TC.
    Also tries to produce >= 2 grid steps so v7x's two TensorCores both stream.
    """
    elem = 4  # float32

    # ---- HW (lane) axis: keep the full row if an 8-row tile fits the budget ----
    if hw * elem * 8 <= target_plane_bytes:
        hw_tile = hw
    else:
        hw_tile = max(128, (target_plane_bytes // (8 * elem)) // 128 * 128)
        hw_tile = min(hw_tile, pl.cdiv(hw, 128) * 128)

    # ---- BC (sublane) axis ------------------------------------------------------
    rows_budget = max(8, (target_plane_bytes // (hw_tile * elem)) // 8 * 8)
    bc_tile = bc if rows_budget >= bc else rows_budget  # full extent or multiple of 8

    # ---- guarantee >= 2 grid steps when legally possible -------------------------
    steps = pl.cdiv(bc, bc_tile) * pl.cdiv(hw, hw_tile)
    if steps < 2:
        if bc >= 16:
            bc_tile = 8 * pl.cdiv(pl.cdiv(bc, 2), 8)          # ~half, multiple of 8
        elif hw >= 256:
            hw_tile = 128 * pl.cdiv(pl.cdiv(hw, 2), 128)      # ~half, multiple of 128
        # else: problem is tiny; a single step is fine.

    return bc_tile, hw_tile


def modulation_layer_pallas(xr, xi, mod, *, n_padd, scale_factor, donate_x=False):
    """xr, xi: (B, C, H, W) float32 real/imag planes.  mod: (size, size) float32.

    donate_x=True aliases the outputs onto the input planes (halves HBM footprint);
    only enable it if xr/xi are not used again after this call.
    """
    B, C, H, W = xr.shape
    size = mod.shape[0]
    inner = size * scale_factor
    assert H == inner + 2 * n_padd and W == inner + 2 * n_padd

    # ---- one-time phase map (tiny) --------------------------------------
    # repeat_interleave along both dims is pure index plumbing (glue).
    m_exp = jnp.repeat(jnp.repeat(mod, scale_factor, axis=0), scale_factor, axis=1)
    cr_in, ci_in = pl.pallas_call(
        _phase_kernel,
        out_shape=(
            jax.ShapeDtypeStruct((inner, inner), jnp.float32),
            jax.ShapeDtypeStruct((inner, inner), jnp.float32),
        ),
    )(m_exp)
    # F.pad of the complex exp pads with 0+0j -> pad the cos/sin maps with 0.0
    # AFTER the transcendentals, so the pad region is exactly zero.
    # TODO(synk): could fold repeat/pad/reshape into _phase_kernel via iota gather;
    # only worth it when launch overhead dominates at tiny sizes.
    pad = ((n_padd, n_padd), (n_padd, n_padd))
    cr = jnp.pad(cr_in, pad).reshape(1, H * W)
    ci = jnp.pad(ci_in, pad).reshape(1, H * W)

    # ---- lane-dense streaming multiply, 2-D tiled ------------------------
    BC, HW = B * C, H * W
    xr2 = xr.reshape(BC, HW)
    xi2 = xi.reshape(BC, HW)

    bc_tile, hw_tile = _choose_tiles(BC, HW)
    grid = (pl.cdiv(BC, bc_tile), pl.cdiv(HW, hw_tile))

    x_spec = pl.BlockSpec((bc_tile, hw_tile), lambda i, j: (i, j))
    p_spec = pl.BlockSpec((1, hw_tile), lambda i, j: (0, j))

    # Scoped-VMEM budget: 4 planes x 2 buffers x tile + 2 phase maps x 2 buffers + margin.
    tile_bytes = bc_tile * hw_tile * 4
    vmem_estimate = 4 * 2 * tile_bytes + 2 * 2 * hw_tile * 4 + (4 << 20)
    vmem_limit = int(min(max(vmem_estimate, 32 << 20), 56 << 20))  # <= v7x 64 MiB physical

    out_r, out_i = pl.pallas_call(
        _modmul_kernel,
        out_shape=(
            jax.ShapeDtypeStruct((BC, HW), jnp.float32),
            jax.ShapeDtypeStruct((BC, HW), jnp.float32),
        ),
        grid=grid,
        in_specs=[x_spec, x_spec, p_spec, p_spec],
        out_specs=[x_spec, x_spec],
        input_output_aliases={0: 0, 1: 1} if donate_x else {},
        compiler_params=pltpu.CompilerParams(
            dimension_semantics=("parallel", "parallel"),
            vmem_limit_bytes=vmem_limit,
        ),
    )(xr2, xi2, cr, ci)

    return out_r.reshape(B, C, H, W), out_i.reshape(B, C, H, W)


def modulation_layer_reference(x_complex, mod, *, n_padd, scale_factor):
    """Pure-JAX reference matching the PyTorch forward exactly (complex64)."""
    m_exp = jnp.repeat(jnp.repeat(mod, scale_factor, axis=0), scale_factor, axis=1)
    mod_phase = jnp.exp(1j * jnp.pi * jax.nn.sigmoid(m_exp)).astype(jnp.complex64)
    mod_phase = jnp.pad(mod_phase, ((n_padd, n_padd), (n_padd, n_padd)))
    return x_complex * mod_phase


if __name__ == "__main__":
    # Small, forward-consistent shapes.
    original_size = 8
    scale_factor = 2
    n_padd = 4
    B, C = 2, 4
    H = W = original_size * scale_factor + 2 * n_padd   # 24

    key = jax.random.PRNGKey(0)
    k_xr, k_xi, k_mod = jax.random.split(key, 3)
    xr = jax.random.normal(k_xr, (B, C, H, W), dtype=jnp.float32)
    xi = jax.random.normal(k_xi, (B, C, H, W), dtype=jnp.float32)
    # Deterministic parameter init (stand-in for torch.randn(size, size)).
    mod = jax.random.normal(k_mod, (original_size, original_size), dtype=jnp.float32)

    out_r, out_i = modulation_layer_pallas(
        xr, xi, mod, n_padd=n_padd, scale_factor=scale_factor
    )
    jax.block_until_ready((out_r, out_i))

    # Verify against the complex-valued reference.
    x_complex = xr.astype(jnp.complex64) + 1j * xi.astype(jnp.complex64)
    ref = modulation_layer_reference(
        x_complex, mod, n_padd=n_padd, scale_factor=scale_factor
    )
    np.testing.assert_allclose(np.asarray(out_r), np.real(np.asarray(ref)),
                               rtol=1e-5, atol=1e-5)
    np.testing.assert_allclose(np.asarray(out_i), np.imag(np.asarray(ref)),
                               rtol=1e-5, atol=1e-5)

    print("KERNEL_OK")
</pallas_src>

<mosaic_0001>
module attributes {stable_mosaic.version = 11 : i64} {
  func.func @_phase_kernel(%arg0: memref<16x16xf32, #tpu.memory_space<vmem>>, %arg1: memref<16x16xf32, #tpu.memory_space<vmem>>, %arg2: memref<16x16xf32, #tpu.memory_space<vmem>>) attributes {dimension_semantics = [], scalar_prefetch = 0 : i64, scratch_operands = 0 : i64, tpu.core_type = #tpu.core_type<tc>} {
    %c0 = arith.constant 0 : index
    %c0_0 = arith.constant 0 : index
    %0 = vector.load %arg0[%c0, %c0_0] : memref<16x16xf32, #tpu.memory_space<vmem>>, vector<16x16xf32>
    %1 = arith.negf %0 : vector<16x16xf32>
    %2 = math.exp %1 : vector<16x16xf32>
    %cst = arith.constant 1.000000e+00 : f32
    %3 = vector.broadcast %cst : f32 to vector<16x16xf32>
    %4 = arith.addf %3, %2 : vector<16x16xf32>
    %5 = arith.divf %3, %4 : vector<16x16xf32>
    %cst_1 = arith.constant 3.14159274 : f32
    %6 = vector.broadcast %cst_1 : f32 to vector<16x16xf32>
    %7 = arith.mulf %6, %5 : vector<16x16xf32>
    %8 = math.cos %7 : vector<16x16xf32>
    %c0_2 = arith.constant 0 : index
    %c0_3 = arith.constant 0 : index
    %9 = vector.load %arg1[%c0_2, %c0_3] : memref<16x16xf32, #tpu.memory_space<vmem>>, vector<16x16xf32>
    tpu.vector_store %arg1[%c0_2, %c0_3], %8 {strides = array<i32>} : memref<16x16xf32, #tpu.memory_space<vmem>>, vector<16x16xf32>,
    %10 = math.sin %7 : vector<16x16xf32>
    %c0_4 = arith.constant 0 : index
    %c0_5 = arith.constant 0 : index
    %11 = vector.load %arg2[%c0_4, %c0_5] : memref<16x16xf32, #tpu.memory_space<vmem>>, vector<16x16xf32>
    tpu.vector_store %arg2[%c0_4, %c0_5], %10 {strides = array<i32>} : memref<16x16xf32, #tpu.memory_space<vmem>>, vector<16x16xf32>,
    return
  }
}

</mosaic_0001>

<llo_original>
// kernel: tpu_custom_call.1
$region0: #{tpu_custom_call.1}
  #allocation0 [shape = 'u32[]', space=smem, size = 0x4, offset = 0x4, fixed_abs, tag = 'smem constant byte address 0x4 - core index']
  #allocation1 [shape = 'u32[144,128]{1,0:T(1,128)}', space=vmem, size = 0x12000, scoped, tag = 'internal scratch']
  %s0 = inlined_call_operand.hbm [shape: f32[16,16], index: 0, kind: input, shape index: {}]
  %s1 = inlined_call_operand.hbm [shape: f32[16,16], index: 1, kind: output, shape index: {0}]
  %s2 = inlined_call_operand.hbm [shape: f32[16,16], index: 2, kind: output, shape index: {1}]
  %3 = xla_tuple %s1, %s2
  %s4 = sld [smem:[#allocation0]]
  $region26: #{tpu_custom_call.1} parent=0
    _
  %s6 = ssub.s32 1, %s4
  %s7 = scalar_select 0, %s6, %s4
  $region1: #{tpu_custom_call.1} parent=0
    #allocation2 [shape = 'u8[8192]{0}', space=vmem, size = 0x2000, scoped, tag = 'input window, operand 0, single buffered']
    #allocation3 [shape = 's32[1]{0}', space=sflag, size = 0x4, scoped, tag = 'scoped memory for tpu_custom_call.1']
    #allocation4 [shape = 's32[1]{0}', space=sflag, size = 0x4, scoped, tag = 'scoped memory for tpu_custom_call.1']
    #allocation5 [shape = 'u8[8192]{0}', space=vmem, size = 0x2000, scoped, tag = 'output window, operand 0, single buffered']
    #allocation6 [shape = 'u8[8192]{0}', space=vmem, size = 0x2000, scoped, tag = 'output window, operand 1, single buffered']
    #allocation7 [shape = 's32[1]{0}', space=sflag, size = 0x4, scoped, tag = 'scoped memory for tpu_custom_call.1']
    %8 = vsyncpa [#allocation3], 0
    %9 = vsyncpa [#allocation4], 0
    %10 = vsyncpa [#allocation7], 0
    // Predicated region
    $region2: #{tpu_custom_call.1} parent=1 // pred_check
      _
    $region3: #{tpu_custom_call.1} parent=1 // pred_check_branch
      %12 = sbr.rel (0) target = $region5
    $region4: #{tpu_custom_call.1} parent=1 // pred_region
      %s14 = ssub.s32 256, 256
      %15 = vsyncadd [#allocation3], %s14
      %s16 = sshll.u32 [#allocation2], 4
      %s17 = int_to_ptr.vmem [resolvable:$true] %s16
      %22 = dma.hbm_to_vmem [thread:$0]  %s0, 256, %s17, [#allocation3], 128, 128, 8
    $region5: #{tpu_custom_call.1} parent=1 // pred_fallthru
      _
    // Predicated region
    $region6: #{tpu_custom_call.1} parent=1 // pred_check
      _
    $region7: #{tpu_custom_call.1} parent=1 // pred_check_branch
      %24 = sbr.rel (0) target = $region9
    $region8: #{tpu_custom_call.1} parent=1 // pred_region
      %25 = dma.done [#allocation3], 256
    $region9: #{tpu_custom_call.1} parent=1 // pred_fallthru
      _
    %v26 = vld [vmem:[#allocation2] sm:$0xff]
    %v27 = vld [vmem:[#allocation2 + $0x8] sm:$0xff]
    %v28 = vxor.u32 %v26, 2147483648
    %v29 = vxor.u32 %v27, 2147483648
    %v30 = vmul.f32 %v28, 1.442695
    %v31 = vpow.pop %v30
    %v32 = vmul.f32 %v29, 1.442695
    %v33 = vpow.pop %v32
    %v34 = vadd.f32 %v31, 1.0
    %v35 = vadd.f32 %v33, 1.0
    %v36 = vrcp.pop %v34
    %v37 = vmul.f32 1.0, %v36
    %v38 = vrcp.pop %v35
    %v39 = vmul.f32 1.0, %v38
    %v40 = vmul.f32 %v37, 3.1415927
    %v41 = vmul.f32 %v39, 3.1415927
    %v42 = vand.u32 2147483647, %v40
    %vm43 = vcmp.le.f32.partialorder %v42, 0.7853982
    %vm44 = vcmp.lt.s32.totalorder %v40, 0
    %v45 = vand.u32 %v40, 2139095040
    %v46 = vshrl.u32 %v45, 23
    %v47 = vsub.s32 %v46, 127
    %v48 = vand.u32 2147483647, %v40
    %v49 = vand.u32 %v48, 8388607
    %v50 = vor.u32 %v49, 8388608
    %v51 = vsub.s32 0, %v50
    %v52 = vadd.s32 %v47, 1
    %vm53 = vcmp.gt.s32.totalorder %v52, 0
    %v54 = vsel %vm53, %v52, 0
    %v55 = vshrl.u32 %v54, 5
    %v56 = vand.u32 %v54, 31
    %v57 = vsub.s32 32, %v56
    %v58 = vshrl.u32 683565275, %v57
    %v59 = vshll.u32 683565275, %v56
    %v60 = vshrl.u32 2475754826, %v57
    %v61 = vor.u32 %v59, %v60
    %v62 = vshll.u32 2475754826, %v56
    %v63 = vshrl.u32 2131351028, %v57
    %v64 = vor.u32 %v62, %v63
    %v65 = vshll.u32 2131351028, %v56
    %v66 = vshrl.u32 2102212464, %v57
    %v67 = vor.u32 %v65, %v66
    %v68 = vshll.u32 2102212464, %v56
    %v69 = vshrl.u32 920167782, %v57
    %v70 = vor.u32 %v68, %v69
    %v71 = vshll.u32 920167782, %v56
    %v72 = vshrl.u32 1326507024, %v57
    %v73 = vor.u32 %v71, %v72
    %vm74 = vcmp.lt.s32.totalorder %v55, 1
    %vm75 = vcmp.lt.s32.totalorder %v55, 2
    %vm76 = vcmp.lt.s32.totalorder %v55, 3
    %vm77 = vcmp.lt.s32.totalorder %v55, 4
    %v78 = vsel %vm74, %v58, %v61
    %v79 = vsel %vm77, %v67, 2102212464
    %v80 = vsel %vm76, %v64, %v79
    %v81 = vsel %vm75, %v78, %v80
    %v82 = vsel %vm74, %v61, %v64
    %v83 = vsel %vm77, %v70, 920167782
    %v84 = vsel %vm76, %v67, %v83
    %v85 = vsel %vm75, %v82, %v84
    %v86 = vsel %vm74, %v64, %v67
    %v87 = vsel %vm77, %v73, 1326507024
    %v88 = vsel %vm76, %v70, %v87
    %v89 = vsel %vm75, %v86, %v88
    %v90 = vshll.u32 %v50, 8
    %v91 = vmul.u32.u64.compose %v90, %v89
    %v92 = vextract.low.u32 %v91
    %v93 = vextract.high.u32 %v91
    %v94 = vmul.u32.u64.compose %v90, %v85
    %v95 = vextract.low.u32 %v94
    %v96 = vextract.high.u32 %v94
    %v97 = vmul.u32 %v90, %v81
    %v98 = vadd.s32 %v93, %v95
    %vm99 = vc.u32 %v93, %v95
    %v100 = vadd.s32 %v96, 1
    %v101 = vsel %vm99, %v100, %v96
    %v102 = vadd.s32 %v97, %v101
    %v103 = vadd.s32 %v102, 536870912
    %v104 = vshrl.u32 %v103, 30
    %v105 = vshll.u32 %v104, 30
    %v106 = vsub.s32 %v102, %v105
    %vm107 = vcmp.lt.s32.totalorder %v106, 0
    %v108 = vsub.s32 0, %v106
    %v109 = vsel %vm107, %v108, %v106
    %v110 = vclz %v109
    %v111 = vsub.s32 %v110, 2
    %vm112 = vcmp.gt.s32.totalorder 0, %v111
    %v113 = vsel %vm112, 0, %v111
    %v114 = vsub.s32 32, %v113
    %v115 = vshll.u32 %v106, %v113
    %v116 = vshrl.u32 %v98, %v114
    %v117 = vor.u32 %v115, %v116
    %v118 = vsub.s32 4294967266, %v113
    %v119 = vadd.s32 %v118, 127
    %v120 = vshll.u32 %v119, 23
    %v121 = vor.u32 4788187, %v120
    %v122 = vand.u32 2147483647, %v121
    %v124 = vcvt.s32.f32 %v117
    %v125 = vmul.f32 %v124, %v122
    %v126 = vxor.u32 %v125, 2147483648
    %v127 = vsel %vm44, %v126, %v125
    %v128 = vsub.s32 4, %v104
    %v129 = vsel %vm44, %v128, %v104
    %v130 = vsel %vm43, %v40, %v127
    %v131 = vsel %vm43, 0, %v129
    %v132 = vcosq.f32.pop %v130
    %v133 = vsinq.f32.pop %v130
    %vm134 = vweird.f32 %v40
    %v135 = vand.u32 %v131, 3
    %vm136 = vcmp.lt.s32.totalorder %v135, 2
    %vm137 = vcmp.eq.s32.totalorder %v135, 0
    %v138 = vxor.u32 %v133, 2147483648
    %v139 = vsel %vm137, %v132, %v138
    %vm140 = vcmp.eq.s32.totalorder %v135, 2
    %v141 = vxor.u32 %v132, 2147483648
    %v142 = vsel %vm140, %v141, %v133
    %v143 = vsel %vm136, %v139, %v142
    %v144 = vsel %vm134, nan, %v143
    %v145 = vand.u32 2147483647, %v41
    %vm146 = vcmp.le.f32.partialorder %v145, 0.7853982
    %vm147 = vcmp.lt.s32.totalorder %v41, 0
    %v148 = vand.u32 %v41, 2139095040
    %v149 = vshrl.u32 %v148, 23
    %v150 = vsub.s32 %v149, 127
    %v151 = vand.u32 2147483647, %v41
    %v152 = vand.u32 %v151, 8388607
    %v153 = vor.u32 %v152, 8388608
    %v154 = vsub.s32 0, %v153
    %v155 = vadd.s32 %v150, 1
    %vm156 = vcmp.gt.s32.totalorder %v155, 0
    %v157 = vsel %vm156, %v155, 0
    %v158 = vshrl.u32 %v157, 5
    %v159 = vand.u32 %v157, 31
    %v160 = vsub.s32 32, %v159
    %v161 = vshrl.u32 683565275, %v160
    %v162 = vshll.u32 683565275, %v159
    %v163 = vshrl.u32 2475754826, %v160
    %v164 = vor.u32 %v162, %v163
    %v165 = vshll.u32 2475754826, %v159
    %v166 = vshrl.u32 2131351028, %v160
    %v167 = vor.u32 %v165, %v166
    %v168 = vshll.u32 2131351028, %v159
    %v169 = vshrl.u32 2102212464, %v160
    %v170 = vor.u32 %v168, %v169
    %v171 = vshll.u32 2102212464, %v159
    %v172 = vshrl.u32 920167782, %v160
    %v173 = vor.u32 %v171, %v172
    %v174 = vshll.u32 920167782, %v159
    %v175 = vshrl.u32 1326507024, %v160
    %v176 = vor.u32 %v174, %v175
    %vm177 = vcmp.lt.s32.totalorder %v158, 1
    %vm178 = vcmp.lt.s32.totalorder %v158, 2
    %vm179 = vcmp.lt.s32.totalorder %v158, 3
    %vm180 = vcmp.lt.s32.totalorder %v158, 4
    %v181 = vsel %vm177, %v161, %v164
    %v182 = vsel %vm180, %v170, 2102212464
    %v183 = vsel %vm179, %v167, %v182
    %v184 = vsel %vm178, %v181, %v183
    %v185 = vsel %vm177, %v164, %v167
    %v186 = vsel %vm180, %v173, 920167782
    %v187 = vsel %vm179, %v170, %v186
    %v188 = vsel %vm178, %v185, %v187
    %v189 = vsel %vm177, %v167, %v170
    %v190 = vsel %vm180, %v176, 1326507024
    %v191 = vsel %vm179, %v173, %v190
    %v192 = vsel %vm178, %v189, %v191
    %v193 = vshll.u32 %v153, 8
    %v194 = vmul.u32.u64.compose %v193, %v192
    %v195 = vextract.low.u32 %v194
    %v196 = vextract.high.u32 %v194
    %v197 = vmul.u32.u64.compose %v193, %v188
    %v198 = vextract.low.u32 %v197
    %v199 = vextract.high.u32 %v197
    %v200 = vmul.u32 %v193, %v184
    %v201 = vadd.s32 %v196, %v198
    %vm202 = vc.u32 %v196, %v198
    %v203 = vadd.s32 %v199, 1
    %v204 = vsel %vm202, %v203, %v199
    %v205 = vadd.s32 %v200, %v204
    %v206 = vadd.s32 %v205, 536870912
    %v207 = vshrl.u32 %v206, 30
    %v208 = vshll.u32 %v207, 30
    %v209 = vsub.s32 %v205, %v208
    %vm210 = vcmp.lt.s32.totalorder %v209, 0
    %v211 = vsub.s32 0, %v209
    %v212 = vsel %vm210, %v211, %v209
    %v213 = vclz %v212
    %v214 = vsub.s32 %v213, 2
    %vm215 = vcmp.gt.s32.totalorder 0, %v214
    %v216 = vsel %vm215, 0, %v214
    %v217 = vsub.s32 32, %v216
    %v218 = vshll.u32 %v209, %v216
    %v219 = vshrl.u32 %v201, %v217
    %v220 = vor.u32 %v218, %v219
    %v221 = vsub.s32 4294967266, %v216
    %v222 = vadd.s32 %v221, 127
    %v223 = vshll.u32 %v222, 23
    %v224 = vor.u32 4788187, %v223
    %v225 = vand.u32 2147483647, %v224
    %v227 = vcvt.s32.f32 %v220
    %v228 = vmul.f32 %v227, %v225
    %v229 = vxor.u32 %v228, 2147483648
    %v230 = vsel %vm147, %v229, %v228
    %v231 = vsub.s32 4, %v207
    %v232 = vsel %vm147, %v231, %v207
    %v233 = vsel %vm146, %v41, %v230
    %v234 = vsel %vm146, 0, %v232
    %v235 = vcosq.f32.pop %v233
    %v236 = vsinq.f32.pop %v233
    %vm237 = vweird.f32 %v41
    %v238 = vand.u32 %v234, 3
    %vm239 = vcmp.lt.s32.totalorder %v238, 2
    %vm240 = vcmp.eq.s32.totalorder %v238, 0
    %v241 = vxor.u32 %v236, 2147483648
    %v242 = vsel %vm240, %v235, %v241
    %vm243 = vcmp.eq.s32.totalorder %v238, 2
    %v244 = vxor.u32 %v235, 2147483648
    %v245 = vsel %vm243, %v244, %v236
    %v246 = vsel %vm239, %v242, %v245
    %v247 = vsel %vm237, nan, %v246
    %vm248 = vcmask 130048
    %249 = vst.msk [vmem:[#allocation5] sm:$0xff] %vm248, %v144
    %250 = vst.msk [vmem:[#allocation5 + $0x8] sm:$0xff] %vm248, %v247
    %v251 = vand.u32 2147483647, %v40
    %vm252 = vcmp.le.f32.partialorder %v251, 0.7853982
    %vm253 = vcmp.lt.s32.totalorder %v40, 0
    %v254 = vand.u32 %v40, 2139095040
    %v255 = vshrl.u32 %v254, 23
    %v256 = vsub.s32 %v255, 127
    %v257 = vand.u32 2147483647, %v40
    %v258 = vand.u32 %v257, 8388607
    %v259 = vor.u32 %v258, 8388608
    %v260 = vsub.s32 0, %v259
    %v261 = vadd.s32 %v256, 1
    %vm262 = vcmp.gt.s32.totalorder %v261, 0
    %v263 = vsel %vm262, %v261, 0
    %v264 = vshrl.u32 %v263, 5
    %v265 = vand.u32 %v263, 31
    %v266 = vsub.s32 32, %v265
    %v267 = vshrl.u32 683565275, %v266
    %v268 = vshll.u32 683565275, %v265
    %v269 = vshrl.u32 2475754826, %v266
    %v270 = vor.u32 %v268, %v269
    %v271 = vshll.u32 2475754826, %v265
    %v272 = vshrl.u32 2131351028, %v266
    %v273 = vor.u32 %v271, %v272
    %v274 = vshll.u32 2131351028, %v265
    %v275 = vshrl.u32 2102212464, %v266
    %v276 = vor.u32 %v274, %v275
    %v277 = vshll.u32 2102212464, %v265
    %v278 = vshrl.u32 920167782, %v266
    %v279 = vor.u32 %v277, %v278
    %v280 = vshll.u32 920167782, %v265
    %v281 = vshrl.u32 1326507024, %v266
    %v282 = vor.u32 %v280, %v281
    %vm283 = vcmp.lt.s32.totalorder %v264, 1
    %vm284 = vcmp.lt.s32.totalorder %v264, 2
    %vm285 = vcmp.lt.s32.totalorder %v264, 3
    %vm286 = vcmp.lt.s32.totalorder %v264, 4
    %v287 = vsel %vm283, %v267, %v270
    %v288 = vsel %vm286, %v276, 2102212464
    %v289 = vsel %vm285, %v273, %v288
    %v290 = vsel %vm284, %v287, %v289
    %v291 = vsel %vm283, %v270, %v273
    %v292 = vsel %vm286, %v279, 920167782
    %v293 = vsel %vm285, %v276, %v292
    %v294 = vsel %vm284, %v291, %v293
    %v295 = vsel %vm283, %v273, %v276
    %v296 = vsel %vm286, %v282, 1326507024
    %v297 = vsel %vm285, %v279, %v296
    %v298 = vsel %vm284, %v295, %v297
    %v299 = vshll.u32 %v259, 8
    %v300 = vmul.u32.u64.compose %v299, %v298
    %v301 = vextract.low.u32 %v300
    %v302 = vextract.high.u32 %v300
    %v303 = vmul.u32.u64.compose %v299, %v294
    %v304 = vextract.low.u32 %v303
    %v305 = vextract.high.u32 %v303
    %v306 = vmul.u32 %v299, %v290
    %v307 = vadd.s32 %v302, %v304
    %vm308 = vc.u32 %v302, %v304
    %v309 = vadd.s32 %v305, 1
    %v310 = vsel %vm308, %v309, %v305
    %v311 = vadd.s32 %v306, %v310
    %v312 = vadd.s32 %v311, 536870912
    %v313 = vshrl.u32 %v312, 30
    %v314 = vshll.u32 %v313, 30
    %v315 = vsub.s32 %v311, %v314
    %vm316 = vcmp.lt.s32.totalorder %v315, 0
    %v317 = vsub.s32 0, %v315
    %v318 = vsel %vm316, %v317, %v315
    %v319 = vclz %v318
    %v320 = vsub.s32 %v319, 2
    %vm321 = vcmp.gt.s32.totalorder 0, %v320
    %v322 = vsel %vm321, 0, %v320
    %v323 = vsub.s32 32, %v322
    %v324 = vshll.u32 %v315, %v322
    %v325 = vshrl.u32 %v307, %v323
    %v326 = vor.u32 %v324, %v325
    %v327 = vsub.s32 4294967266, %v322
    %v328 = vadd.s32 %v327, 127
    %v329 = vshll.u32 %v328, 23
    %v330 = vor.u32 4788187, %v329
    %v331 = vand.u32 2147483647, %v330
    %v333 = vcvt.s32.f32 %v326
    %v334 = vmul.f32 %v333, %v331
    %v335 = vxor.u32 %v334, 2147483648
    %v336 = vsel %vm253, %v335, %v334
    %v337 = vsub.s32 4, %v313
    %v338 = vsel %vm253, %v337, %v313
    %v339 = vsel %vm252, %v40, %v336
    %v340 = vsel %vm252, 0, %v338
    %v341 = vcosq.f32.pop %v339
    %v342 = vsinq.f32.pop %v339
    %vm343 = vweird.f32 %v40
    %v344 = vadd.s32 %v340, 3
    %v345 = vand.u32 %v344, 3
    %vm346 = vcmp.lt.s32.totalorder %v345, 2
    %vm347 = vcmp.eq.s32.totalorder %v345, 0
    %v348 = vxor.u32 %v342, 2147483648
    %v349 = vsel %vm347, %v341, %v348
    %vm350 = vcmp.eq.s32.totalorder %v345, 2
    %v351 = vxor.u32 %v341, 2147483648
    %v352 = vsel %vm350, %v351, %v342
    %v353 = vsel %vm346, %v349, %v352
    %v354 = vsel %vm343, nan, %v353
    %v355 = vand.u32 2147483647, %v41
    %vm356 = vcmp.le.f32.partialorder %v355, 0.7853982
    %vm357 = vcmp.lt.s32.totalorder %v41, 0
    %v358 = vand.u32 %v41, 2139095040
    %v359 = vshrl.u32 %v358, 23
    %v360 = vsub.s32 %v359, 127
    %v361 = vand.u32 2147483647, %v41
    %v362 = vand.u32 %v361, 8388607
    %v363 = vor.u32 %v362, 8388608
    %v364 = vsub.s32 0, %v363
    %v365 = vadd.s32 %v360, 1
    %vm366 = vcmp.gt.s32.totalorder %v365, 0
    %v367 = vsel %vm366, %v365, 0
    %v368 = vshrl.u32 %v367, 5
    %v369 = vand.u32 %v367, 31
    %v370 = vsub.s32 32, %v369
    %v371 = vshrl.u32 683565275, %v370
    %v372 = vshll.u32 683565275, %v369
    %v373 = vshrl.u32 2475754826, %v370
    %v374 = vor.u32 %v372, %v373
    %v375 = vshll.u32 2475754826, %v369
    %v376 = vshrl.u32 2131351028, %v370
    %v377 = vor.u32 %v375, %v376
    %v378 = vshll.u32 2131351028, %v369
    %v379 = vshrl.u32 2102212464, %v370
    %v380 = vor.u32 %v378, %v379
    %v381 = vshll.u32 2102212464, %v369
    %v382 = vshrl.u32 920167782, %v370
    %v383 = vor.u32 %v381, %v382
    %v384 = vshll.u32 920167782, %v369
    %v385 = vshrl.u32 1326507024, %v370
    %v386 = vor.u32 %v384, %v385
    %vm387 = vcmp.lt.s32.totalorder %v368, 1
    %vm388 = vcmp.lt.s32.totalorder %v368, 2
    %vm389 = vcmp.lt.s32.totalorder %v368, 3
    %vm390 = vcmp.lt.s32.totalorder %v368, 4
    %v391 = vsel %vm387, %v371, %v374
    %v392 = vsel %vm390, %v380, 2102212464
    %v393 = vsel %vm389, %v377, %v392
    %v394 = vsel %vm388, %v391, %v393
    %v395 = vsel %vm387, %v374, %v377
    %v396 = vsel %vm390, %v383, 920167782
    %v397 = vsel %vm389, %v380, %v396
    %v398 = vsel %vm388, %v395, %v397
    %v399 = vsel %vm387, %v377, %v380
    %v400 = vsel %vm390, %v386, 1326507024
    %v401 = vsel %vm389, %v383, %v400
    %v402 = vsel %vm388, %v399, %v401
    %v403 = vshll.u32 %v363, 8
    %v404 = vmul.u32.u64.compose %v403, %v402
    %v405 = vextract.low.u32 %v404
    %v406 = vextract.high.u32 %v404
    %v407 = vmul.u32.u64.compose %v403, %v398
    %v408 = vextract.low.u32 %v407
    %v409 = vextract.high.u32 %v407
    %v410 = vmul.u32 %v403, %v394
    %v411 = vadd.s32 %v406, %v408
    %vm412 = vc.u32 %v406, %v408
    %v413 = vadd.s32 %v409, 1
    %v414 = vsel %vm412, %v413, %v409
    %v415 = vadd.s32 %v410, %v414
    %v416 = vadd.s32 %v415, 536870912
    %v417 = vshrl.u32 %v416, 30
    %v418 = vshll.u32 %v417, 30
    %v419 = vsub.s32 %v415, %v418
    %vm420 = vcmp.lt.s32.totalorder %v419, 0
    %v421 = vsub.s32 0, %v419
    %v422 = vsel %vm420, %v421, %v419
    %v423 = vclz %v422
    %v424 = vsub.s32 %v423, 2
    %vm425 = vcmp.gt.s32.totalorder 0, %v424
    %v426 = vsel %vm425, 0, %v424
    %v427 = vsub.s32 32, %v426
    %v428 = vshll.u32 %v419, %v426
    %v429 = vshrl.u32 %v411, %v427
    %v430 = vor.u32 %v428, %v429
    %v431 = vsub.s32 4294967266, %v426
    %v432 = vadd.s32 %v431, 127
    %v433 = vshll.u32 %v432, 23
    %v434 = vor.u32 4788187, %v433
    %v435 = vand.u32 2147483647, %v434
    %v437 = vcvt.s32.f32 %v430
    %v438 = vmul.f32 %v437, %v435
    %v439 = vxor.u32 %v438, 2147483648
    %v440 = vsel %vm357, %v439, %v438
    %v441 = vsub.s32 4, %v417
    %v442 = vsel %vm357, %v441, %v417
    %v443 = vsel %vm356, %v41, %v440
    %v444 = vsel %vm356, 0, %v442
    %v445 = vcosq.f32.pop %v443
    %v446 = vsinq.f32.pop %v443
    %vm447 = vweird.f32 %v41
    %v448 = vadd.s32 %v444, 3
    %v449 = vand.u32 %v448, 3
    %vm450 = vcmp.lt.s32.totalorder %v449, 2
    %vm451 = vcmp.eq.s32.totalorder %v449, 0
    %v452 = vxor.u32 %v446, 2147483648
    %v453 = vsel %vm451, %v445, %v452
    %vm454 = vcmp.eq.s32.totalorder %v449, 2
    %v455 = vxor.u32 %v445, 2147483648
    %v456 = vsel %vm454, %v455, %v446
    %v457 = vsel %vm450, %v453, %v456
    %v458 = vsel %vm447, nan, %v457
    %459 = vst.msk [vmem:[#allocation6] sm:$0xff] %vm248, %v354
    %460 = vst.msk [vmem:[#allocation6 + $0x8] sm:$0xff] %vm248, %v458
    // Predicated region
    $region10: #{tpu_custom_call.1} parent=1 // pred_check
      _
    $region11: #{tpu_custom_call.1} parent=1 // pred_check_branch
      %462 = sbr.rel (0) target = $region13
    $region12: #{tpu_custom_call.1} parent=1 // pred_region
      %s464 = ssub.s32 256, 256
      %465 = vsyncadd [#allocation4], %s464
      %s466 = sshll.u32 [#allocation5], 4
      %s467 = int_to_ptr.vmem [resolvable:$true] %s466
      %472 = dma.vmem_to_hbm [thread:$0]  %s467, 256, %s1, [#allocation4], 128, 128, 8
    $region13: #{tpu_custom_call.1} parent=1 // pred_fallthru
      _
    // Predicated region
    $region14: #{tpu_custom_call.1} parent=1 // pred_check
      _
    $region15: #{tpu_custom_call.1} parent=1 // pred_check_branch
      %474 = sbr.rel (0) target = $region17
    $region16: #{tpu_custom_call.1} parent=1 // pred_region
      %s476 = ssub.s32 256, 256
      %477 = vsyncadd [#allocation7], %s476
      %s478 = sshll.u32 [#allocation6], 4
      %s479 = int_to_ptr.vmem [resolvable:$true] %s478
      %484 = dma.vmem_to_hbm [thread:$0]  %s479, 256, %s2, [#allocation7], 128, 128, 8
    $region17: #{tpu_custom_call.1} parent=1 // pred_fallthru
      _
    // Predicated region
    $region18: #{tpu_custom_call.1} parent=1 // pred_check
      _
    $region19: #{tpu_custom_call.1} parent=1 // pred_check_branch
      %486 = sbr.rel (0) target = $region21
    $region20: #{tpu_custom_call.1} parent=1 // pred_region
      %487 = dma.done [#allocation4], 256
    $region21: #{tpu_custom_call.1} parent=1 // pred_fallthru
      _
    // Predicated region
    $region22: #{tpu_custom_call.1} parent=1 // pred_check
      _
    $region23: #{tpu_custom_call.1} parent=1 // pred_check_branch
      %489 = sbr.rel (0) target = $region25
    $region24: #{tpu_custom_call.1} parent=1 // pred_region
      %490 = dma.done [#allocation7], 256
    $region25: #{tpu_custom_call.1} parent=1 // pred_fallthru
      _
    %491 = vsyncpa [#allocation3], 1
    %492 = vsyncpa [#allocation4], 1
    %493 = vsyncpa [#allocation7], 1

</llo_original>
